<compile_context>
chip_gen: v6e
topology: v6e:2x2x1
jax: 0.10.0
libtpu: 0.0.40
codegen_flags: <defaults>
</compile_context>

<pallas_src>
import jax
import jax.numpy as jnp
from jax.experimental import pallas as pl
from jax.experimental.pallas import tpu as pltpu


def _outconv_kernel(x_ref, w_ref, b_ref, o_ref):
    # x_ref: (Cin, thw)   activation tile, H*W on the lane axis
    # w_ref: (Cout, Cin)  full 1x1-conv weight (constant index_map -> resident)
    # b_ref: (Cout, 1)    bias
    # o_ref: (Cout, thw)  lane-dense output tile
    acc = jnp.dot(
        w_ref[...],
        x_ref[...],
        preferred_element_type=jnp.float32,
        precision=jax.lax.Precision.HIGHEST,
    )
    o_ref[...] = (acc + b_ref[...]).astype(o_ref.dtype)


def _pick_tile_hw(hw, n, cin, cout, itemsize,
                  vmem_budget_bytes=24 << 20, max_tile=32768):
    """Pick the H*W tile width (lane axis).

    Budget: double-buffered input+output tile ~ 2*(cin+cout)*thw*itemsize must
    fit a conservative VMEM budget (safe for v7x's 64 MiB / 32 MiB scoped).
    Prefer a multiple-of-128 divisor of hw (no ragged masked tail), and keep at
    least 2 grid steps when N == 1 so both v7x TensorCores stream.
    """
    cap = max(128, vmem_budget_bytes // (2 * (cin + cout) * itemsize))
    cap = min(cap, max_tile, hw)

    if hw <= cap:
        if n == 1 and hw >= 256 and hw % 256 == 0:
            return hw // 2          # 2 even, 128-aligned steps for v7x megacore
        return hw                   # single full-extent block (always legal)

    # Largest multiple-of-128 divisor of hw not exceeding cap.
    t = (cap // 128) * 128
    while t >= 128:
        if hw % t == 0:
            return t
        t -= 128
    # Fallback: non-dividing tile; Pallas masks the ragged final block.
    return min(hw, max(128, (cap // 128) * 128))


def out_conv(x_nchw, weight, bias):
    """1x1 conv (nn.Conv2d(Cin, Cout, kernel_size=1)) forward on NCHW input.

    x_nchw: (N, Cin, H, W)
    weight: (Cout, Cin, 1, 1)   (PyTorch layout)
    bias:   (Cout,)
    returns (N, Cout, H, W)
    """
    N, Cin, H, W = x_nchw.shape
    Cout = weight.shape[0]
    HW = H * W
    itemsize = jnp.dtype(x_nchw.dtype).itemsize

    # Pure views on the NCHW layout -- no transposes, no pad copies.
    x3 = x_nchw.reshape(N, Cin, HW)          # (N, Cin, HW)
    w2d = weight.reshape(Cout, Cin)          # (Cout, Cin)
    b2d = bias.reshape(Cout, 1)              # (Cout, 1)

    thw = _pick_tile_hw(HW, N, Cin, Cout, itemsize)
    n_hw = pl.cdiv(HW, thw)
    grid = (N, n_hw)

    # Raise the scoped-VMEM limit when using fat tiles (v5e/v6e defaults are
    # 16/32 MiB); clamp to 64 MiB so it is always legal on v7x.
    vmem_needed = (3 * (Cin + Cout) * thw * itemsize
                   + (Cout * Cin + Cout) * itemsize
                   + (4 << 20))
    vmem_limit = int(min(max(vmem_needed, 32 << 20), 64 << 20))

    cost = pl.CostEstimate(
        flops=int(2 * N * HW * Cin * Cout),
        transcendentals=0,
        bytes_accessed=int((N * Cin * HW + N * Cout * HW) * itemsize
                           + (Cout * Cin + Cout) * itemsize),
    )

    y3 = pl.pallas_call(
        _outconv_kernel,
        out_shape=jax.ShapeDtypeStruct((N, Cout, HW), x_nchw.dtype),
        grid_spec=pltpu.PrefetchScalarGridSpec(
            num_scalar_prefetch=0,
            grid=grid,
            in_specs=[
                # activation tile: batch squeezed, full Cin, lane-dense HW tile
                pl.BlockSpec((None, Cin, thw), lambda n, j: (n, 0, j)),
                # weight / bias: tiny, constant index_map -> resident in VMEM
                pl.BlockSpec((Cout, Cin), lambda n, j: (0, 0)),
                pl.BlockSpec((Cout, 1), lambda n, j: (0, 0)),
            ],
            out_specs=pl.BlockSpec((None, Cout, thw), lambda n, j: (n, 0, j)),
        ),
        compiler_params=pltpu.CompilerParams(
            dimension_semantics=("parallel", "parallel"),
            vmem_limit_bytes=vmem_limit,
        ),
        cost_estimate=cost,
    )(x3, w2d, b2d)

    return y3.reshape(N, Cout, H, W)


if __name__ == "__main__":
    key = jax.random.PRNGKey(0)
    kx, kw, kb, kx2, kw2, kb2 = jax.random.split(key, 6)

    # --- Check 1: small shapes matching OutConv(in_channels=4, out_channels=3) ---
    N, Cin, H, W = 2, 4, 16, 16
    Cout = 3
    x = jax.random.normal(kx, (N, Cin, H, W), dtype=jnp.float32)
    weight = jax.random.normal(kw, (Cout, Cin, 1, 1), dtype=jnp.float32) * 0.1
    bias = jax.random.normal(kb, (Cout,), dtype=jnp.float32) * 0.1

    y = out_conv(x, weight, bias)
    y = jax.block_until_ready(y)

    ref = (jnp.einsum("nchw,oc->nohw", x, weight.reshape(Cout, Cin),
                      precision=jax.lax.Precision.HIGHEST)
           + bias[None, :, None, None])
    assert y.shape == (N, Cout, H, W)
    assert jnp.allclose(y, ref, atol=1e-4, rtol=1e-4)

    # --- Check 2: UNet-like OutConv head (Cin=64), N=1, H*W=4096 ->
    #     exercises the even 2-step lane-axis split (2 x 2048-wide tiles).
    N2, Cin2, H2, W2, Cout2 = 1, 64, 64, 64, 3
    x2 = jax.random.normal(kx2, (N2, Cin2, H2, W2), dtype=jnp.float32)
    w2 = jax.random.normal(kw2, (Cout2, Cin2, 1, 1), dtype=jnp.float32) * 0.1
    b2 = jax.random.normal(kb2, (Cout2,), dtype=jnp.float32) * 0.1

    y2 = out_conv(x2, w2, b2)
    y2 = jax.block_until_ready(y2)
    ref2 = (jnp.einsum("nchw,oc->nohw", x2, w2.reshape(Cout2, Cin2),
                       precision=jax.lax.Precision.HIGHEST)
            + b2[None, :, None, None])
    assert y2.shape == (N2, Cout2, H2, W2)
    # Tight tolerance now that both kernel and reference use HIGHEST precision.
    assert jnp.allclose(y2, ref2, atol=1e-3, rtol=1e-3)

    print("KERNEL_OK")
</pallas_src>

<mosaic_0001>
module attributes {stable_mosaic.version = 11 : i64} {
  func.func @_outconv_kernel(%arg0: i32, %arg1: i32, %arg2: memref<1x4x256xf32, #tpu.memory_space<vmem>>, %arg3: memref<3x4xf32, #tpu.memory_space<vmem>>, %arg4: memref<3x1xf32, #tpu.memory_space<vmem>>, %arg5: memref<1x3x256xf32, #tpu.memory_space<vmem>>) attributes {dimension_semantics = [#tpu.dimension_semantics<parallel>, #tpu.dimension_semantics<parallel>], iteration_bounds = array<i64: 2, 1>, scalar_prefetch = 0 : i64, scratch_operands = 0 : i64, tpu.core_type = #tpu.core_type<tc>, window_params = [{transform_indices = @transform_0, window_bounds = array<i64: 1, 4, 256>}, {pipeline_mode = #tpu.pipeline_mode<synchronous>, transform_indices = @transform_1, window_bounds = array<i64: 3, 4>}, {pipeline_mode = #tpu.pipeline_mode<synchronous>, transform_indices = @transform_2, window_bounds = array<i64: 3, 1>}, {transform_indices = @transform_3, window_bounds = array<i64: 1, 3, 256>}]} {
    %c0 = arith.constant 0 : index
    %c0_0 = arith.constant 0 : index
    %0 = vector.load %arg3[%c0, %c0_0] : memref<3x4xf32, #tpu.memory_space<vmem>>, vector<3x4xf32>
    %c0_1 = arith.constant 0 : index
    %c0_2 = arith.constant 0 : index
    %c0_3 = arith.constant 0 : index
    %1 = vector.load %arg2[%c0_1, %c0_2, %c0_3] : memref<1x4x256xf32, #tpu.memory_space<vmem>>, vector<1x4x256xf32>
    %2 = vector.shape_cast %1 : vector<1x4x256xf32> to vector<4x256xf32>
    %cst = arith.constant dense<0.000000e+00> : vector<3x256xf32>
    %3 = tpu.matmul %0, %2, %cst {dimension_numbers = #tpu.dot_dimension_numbers<[1], [0], [0], [1], [0, 0, 1, 1], [], []>, precision = #tpu.contract_precision<fp32>} : vector<3x4xf32>, vector<4x256xf32>, vector<3x256xf32> -> vector<3x256xf32>
    %c0_4 = arith.constant 0 : index
    %c0_5 = arith.constant 0 : index
    %4 = vector.load %arg4[%c0_4, %c0_5] : memref<3x1xf32, #tpu.memory_space<vmem>>, vector<3x1xf32>
    %5 = vector.broadcast %4 : vector<3x1xf32> to vector<3x256xf32>
    %6 = arith.addf %3, %5 : vector<3x256xf32>
    %c0_6 = arith.constant 0 : index
    %c0_7 = arith.constant 0 : index
    %c0_8 = arith.constant 0 : index
    %7 = vector.load %arg5[%c0_6, %c0_7, %c0_8] : memref<1x3x256xf32, #tpu.memory_space<vmem>>, vector<1x3x256xf32>
    %8 = vector.shape_cast %7 : vector<1x3x256xf32> to vector<3x256xf32>
    %9 = vector.shape_cast %6 : vector<3x256xf32> to vector<1x3x256xf32>
    tpu.vector_store %arg5[%c0_6, %c0_7, %c0_8], %9 {strides = array<i32>} : memref<1x3x256xf32, #tpu.memory_space<vmem>>, vector<1x3x256xf32>,
    return
  }
  func.func @transform_0(%arg0: i32, %arg1: i32) -> (i32, i32, i32) {
    %c0_i32 = arith.constant 0 : i32
    %c0_i32_0 = arith.constant 0 : i32
    return %arg0, %c0_i32, %arg1 : i32, i32, i32
  }
  func.func @transform_1(%arg0: i32, %arg1: i32) -> (i32, i32) {
    %c0_i32 = arith.constant 0 : i32
    %c0_i32_0 = arith.constant 0 : i32
    %c0_i32_1 = arith.constant 0 : i32
    return %c0_i32, %c0_i32_0 : i32, i32
  }
  func.func @transform_2(%arg0: i32, %arg1: i32) -> (i32, i32) {
    %c0_i32 = arith.constant 0 : i32
    %c0_i32_0 = arith.constant 0 : i32
    %c0_i32_1 = arith.constant 0 : i32
    return %c0_i32, %c0_i32_0 : i32, i32
  }
  func.func @transform_3(%arg0: i32, %arg1: i32) -> (i32, i32, i32) {
    %c0_i32 = arith.constant 0 : i32
    %c0_i32_0 = arith.constant 0 : i32
    return %arg0, %c0_i32, %arg1 : i32, i32, i32
  }
}

</mosaic_0001>

<llo_original>
// kernel: tpu_custom_call.1
$region0: #{tpu_custom_call.1}
  #allocation0 [shape = 'u32[]', space=smem, size = 0x4, offset = 0x4, fixed_abs, tag = 'smem constant byte address 0x4 - core index']
  #allocation1 [shape = 'u32[144,128]{1,0:T(1,128)}', space=vmem, size = 0x12000, scoped, tag = 'internal scratch']
  %s0 = inlined_call_operand.hbm [shape: f32[2,4,256], index: 0, kind: input, shape index: {}]
  %s1 = inlined_call_operand.vmem [shape: f32[3,4], index: 1, kind: input, shape index: {}]
  %s2 = inlined_call_operand.vmem [shape: f32[3,1], index: 2, kind: input, shape index: {}]
  %s3 = inlined_call_operand.vmem [shape: f32[2,3,256], index: 3, kind: output, shape index: {}]
  %s4 = sld [smem:[#allocation0]]
  $region49: #{tpu_custom_call.1} parent=0
    _
  %s6 = ssub.s32 1, %s4
  %s7 = scalar_select 0, %s6, %s4
  $region1: #{tpu_custom_call.1} parent=0
    #allocation2 [shape = 'u8[8192]{0}', space=vmem, size = 0x2000, scoped, tag = 'input window, operand 0']
    #allocation3 [shape = 's32[2]{0}', space=sflag, size = 0x8, scoped, tag = 'scoped memory for tpu_custom_call.1']
    %8 = vsyncpa [#allocation3], 0
    %s9 = scalar_lea.sflag [#allocation3], 1
    %10 = vsyncpa %s9, 0
    loop: start=0, step=1, limit=4
    $region2: #{tpu_custom_call.1} parent=1 // loop_pre_header
      _
    $region3: #{tpu_custom_call.1} parent=1 // loop_header
      %s12 = sphi 0, %s16
      %p13 = scmp.ge.s32.totalorder %s12, 4
      %s19 = sphi 0, %s31
      %s20 = sphi 0, %s27
      %s21 = sphi 0, %s19
      %s22 = sphi 0, %s20
      %s23 = sphi 0, %s21
      %s24 = sphi 0, %s22
      %s36 = sphi 0, %s38
      %s39 = sphi 0, %s36
      %s40 = sphi 0, %s39
      %s56 = sphi 0, %s40
      %s60 = sphi 0, %s60
      %s62 = sphi 0, %s60
      %s63 = sphi 0, %s62
      %s77 = sphi 0, %s63
      %s81 = sphi 0, %s81
      %s83 = sphi 0, %s81
      %s84 = sphi 0, %s83
      %s98 = sphi 0, %s84
      %s106 = sphi 0, %s108
      %s109 = sphi 0, %s106
      %s110 = sphi 0, %s109
      %s126 = sphi 0, %s110
    $region4: #{tpu_custom_call.1} parent=1 // loop_header_branch
      %15 = sbr.rel (%p13) target = $region8
    $region5: #{tpu_custom_call.1} parent=1 // loop_body
      %s17 = ssub.s32 %s12, 1
      %s18 = ssub.s32 %s12, 2
      %s25 = sadd.s32 1, %s20
      %p26 = scmp.ge.s32.totalorder %s25, 1
      %s27 = scalar_select %p26, 0, %s25
      %s28 = sadd.s32 1, %s19
      %s29 = scalar_select %p26, %s28, %s19
      %p30 = scmp.ge.s32.totalorder %s29, 2
      %s31 = scalar_select %p30, 0, %s29
      %s32 = ssub.s32 %s19, %s31
      %s33 = ssub.s32 %s20, %s27
      %s34 = sor.u32 %s32, %s33
      %p35 = scmp.eq.s32.totalorder %s34, 0
      %s37 = sadd.s32 %s36, 1
      %s38 = scalar_select %p35, %s36, %s37
      %p41 = pneg %p35
      %p42 = scmp.eq.s32.totalorder %s12, 1
      %p43 = por %p41, %p42
      %p44 = scmp.ne.s32.totalorder %s36, %s39
      %p45 = scmp.eq.s32.totalorder %s12, 0
      %p46 = por %p44, %p45
      %p47 = scmp.ne.s32.totalorder %s36, %s39
      %p48 = scmp.eq.s32.totalorder %s17, 1
      %p49 = por %p47, %p48
      %p50 = scmp.ne.s32.totalorder %s39, %s40
      %p51 = scmp.eq.s32.totalorder %s17, 0
      %p52 = por %p50, %p51
      %p53 = scmp.ne.s32.totalorder %s39, %s40
      %p54 = scmp.eq.s32.totalorder %s18, 1
      %p55 = por %p53, %p54
      %p57 = scmp.ne.s32.totalorder %s40, %s56
      %p58 = scmp.eq.s32.totalorder %s18, 0
      %p59 = por %p57, %p58
      %s61 = sadd.s32 %s60, 1
      %p64 = scmp.eq.s32.totalorder %s12, 1
      %p65 = scmp.ne.s32.totalorder %s60, %s62
      %p66 = scmp.eq.s32.totalorder %s12, 0
      %p67 = por %p65, %p66
      %p68 = scmp.ne.s32.totalorder %s60, %s62
      %p69 = scmp.eq.s32.totalorder %s17, 1
      %p70 = por %p68, %p69
      %p71 = scmp.ne.s32.totalorder %s62, %s63
      %p72 = scmp.eq.s32.totalorder %s17, 0
      %p73 = por %p71, %p72
      %p74 = scmp.ne.s32.totalorder %s62, %s63
      %p75 = scmp.eq.s32.totalorder %s18, 1
      %p76 = por %p74, %p75
      %p78 = scmp.ne.s32.totalorder %s63, %s77
      %p79 = scmp.eq.s32.totalorder %s18, 0
      %p80 = por %p78, %p79
      %s82 = sadd.s32 %s81, 1
      %p85 = scmp.eq.s32.totalorder %s12, 1
      %p86 = scmp.ne.s32.totalorder %s81, %s83
      %p87 = scmp.eq.s32.totalorder %s12, 0
      %p88 = por %p86, %p87
      %p89 = scmp.ne.s32.totalorder %s81, %s83
      %p90 = scmp.eq.s32.totalorder %s17, 1
      %p91 = por %p89, %p90
      %p92 = scmp.ne.s32.totalorder %s83, %s84
      %p93 = scmp.eq.s32.totalorder %s17, 0
      %p94 = por %p92, %p93
      %p95 = scmp.ne.s32.totalorder %s83, %s84
      %p96 = scmp.eq.s32.totalorder %s18, 1
      %p97 = por %p95, %p96
      %p99 = scmp.ne.s32.totalorder %s84, %s98
      %p100 = scmp.eq.s32.totalorder %s18, 0
      %p101 = por %p99, %p100
      %s102 = ssub.s32 %s19, %s31
      %s103 = ssub.s32 %s20, %s27
      %s104 = sor.u32 %s102, %s103
      %p105 = scmp.eq.s32.totalorder %s104, 0
      %s107 = sadd.s32 %s106, 1
      %s108 = scalar_select %p105, %s106, %s107
      %p111 = pneg %p105
      %p112 = scmp.eq.s32.totalorder %s12, 1
      %p113 = por %p111, %p112
      %p114 = scmp.ne.s32.totalorder %s106, %s109
      %p115 = scmp.eq.s32.totalorder %s12, 0
      %p116 = por %p114, %p115
      %p117 = scmp.ne.s32.totalorder %s106, %s109
      %p118 = scmp.eq.s32.totalorder %s17, 1
      %p119 = por %p117, %p118
      %p120 = scmp.ne.s32.totalorder %s109, %s110
      %p121 = scmp.eq.s32.totalorder %s17, 0
      %p122 = por %p120, %p121
      %p123 = scmp.ne.s32.totalorder %s109, %s110
      %p124 = scmp.eq.s32.totalorder %s18, 1
      %p125 = por %p123, %p124
      %p127 = scmp.ne.s32.totalorder %s110, %s126
      %p128 = scmp.eq.s32.totalorder %s18, 0
      %p129 = por %p127, %p128
      %p130 = scmp.le.s32.totalorder 1, %s12
      %p131 = scmp.lt.s32.totalorder %s12, 3
      %p132 = pnand %p130, %p131
      %p133 = pneg %p132
      // Predicated region
      $region9: #{tpu_custom_call.1} parent=5 // pred_check
        _
      $region10: #{tpu_custom_call.1} parent=5 // pred_check_branch
        %135 = sbr.rel (%p132) target = $region12
      $region11: #{tpu_custom_call.1} parent=5 // pred_region
        %s136 = ssub.s32 %s12, 1
        // Predicated region
        $region13: #{tpu_custom_call.1} parent=11 // pred_check
          %p137 = pneg %p73
        $region14: #{tpu_custom_call.1} parent=11 // pred_check_branch
          %139 = sbr.rel (%p137) target = $region16
        $region15: #{tpu_custom_call.1} parent=11 // pred_region
          _
        $region16: #{tpu_custom_call.1} parent=11 // pred_fallthru
          _
        // Predicated region
        $region17: #{tpu_custom_call.1} parent=11 // pred_check
          %p140 = pneg %p94
        $region18: #{tpu_custom_call.1} parent=11 // pred_check_branch
          %142 = sbr.rel (%p140) target = $region20
        $region19: #{tpu_custom_call.1} parent=11 // pred_region
          _
        $region20: #{tpu_custom_call.1} parent=11 // pred_fallthru
          _
      $region12: #{tpu_custom_call.1} parent=5 // pred_fallthru
        _
      %p143 = scmp.lt.s32.totalorder %s12, 2
      // Predicated region
      $region21: #{tpu_custom_call.1} parent=5 // pred_check
        %p144 = pneg %p143
      $region22: #{tpu_custom_call.1} parent=5 // pred_check_branch
        %146 = sbr.rel (%p144) target = $region24
      $region23: #{tpu_custom_call.1} parent=5 // pred_region
        // Predicated region
        $region25: #{tpu_custom_call.1} parent=23 // pred_check
          %p147 = pneg %p46
        $region26: #{tpu_custom_call.1} parent=23 // pred_check_branch
          %149 = sbr.rel (%p147) target = $region28
        $region27: #{tpu_custom_call.1} parent=23 // pred_region
          %s150 = sand.u32 %s36, 1
          %s151 = scalar_lea.sflag [#allocation3], %s150
          %s152 = sand.u32 %s36, 1
          %s153 = smul.addr %s152, 8
          %s154 = scalar_lea.vmem [#allocation2], %s153
          %s155 = smul.u32 2, %s20
          %s157 = ssub.s32 128, 128
          %158 = vsyncadd %s151, %s157
          %s159 = smul.addr %s19, 2
          %s160 = sadd.s32 %s155, %s159
          %s161 = smul.addr %s160, 64
          %s162 = scalar_lea.hbm %s0, %s161
          %s164 = sshll.u32 %s154, 4
          %s165 = int_to_ptr.vmem [resolvable:$true] %s164
          %167 = dma.hbm_to_vmem [thread:$0]  %s162, 128, %s165, %s151
        $region28: #{tpu_custom_call.1} parent=23 // pred_fallthru
          _
      $region24: #{tpu_custom_call.1} parent=5 // pred_fallthru
        _
      %p168 = scmp.le.s32.totalorder 1, %s12
      %p169 = scmp.lt.s32.totalorder %s12, 3
      %p170 = pnand %p168, %p169
      %p171 = pneg %p170
      // Predicated region
      $region29: #{tpu_custom_call.1} parent=5 // pred_check
        _
      $region30: #{tpu_custom_call.1} parent=5 // pred_check_branch
        %173 = sbr.rel (%p170) target = $region32
      $region31: #{tpu_custom_call.1} parent=5 // pred_region
        %s174 = ssub.s32 %s12, 1
        %s175 = sand.u32 %s39, 1
        %s176 = scalar_lea.sflag [#allocation3], %s175
        %s177 = sand.u32 %s39, 1
        %s178 = smul.addr %s177, 8
        %s179 = scalar_lea.vmem [#allocation2], %s178
        // Predicated region
        $region33: #{tpu_custom_call.1} parent=31 // pred_check
          %p180 = pneg %p52
        $region34: #{tpu_custom_call.1} parent=31 // pred_check_branch
          %182 = sbr.rel (%p180) target = $region36
        $region35: #{tpu_custom_call.1} parent=31 // pred_region
          %183 = dma.done %s176, 128
        $region36: #{tpu_custom_call.1} parent=31 // pred_fallthru
          _
        %s184 = sand.u32 %s39, 1
        %s185 = scalar_lea.sflag [#allocation3], %s184
        %s186 = sand.u32 %s39, 1
        %s187 = smul.addr %s186, 8
        %s188 = scalar_lea.vmem [#allocation2], %s187
        %p189 = pneg %p52
        %p190 = pneg %p49
        %p191 = pneg %p73
        %p192 = pneg %p70
        %p193 = pneg %p94
        %p194 = pneg %p91
        %p195 = pneg %p122
        %p196 = pneg %p119
        %s197 = smul.u32 2, %s22
        %p198 = scmp.lt.s32.totalorder %s21, 1
        %s199 = scalar_select %p198, %s21, 1
        %p200 = scmp.lt.s32.totalorder %s197, 1
        %s201 = scalar_select %p200, %s197, 1
        %s202 = smul.addr %s199, 2
        %s203 = sadd.s32 %s201, %s202
        %s204 = smul.addr %s203, 4
        %s205 = scalar_lea.vmem %s3, %s204
        %s206 = smul.u32 2, %s22
        %s207 = smul.u32 2, %s22
        %p208 = scmp.lt.s32.totalorder %s21, 1
        %s209 = scalar_select %p208, %s21, 1
        %p210 = scmp.lt.s32.totalorder %s207, 1
        %s211 = scalar_select %p210, %s207, 1
        %s212 = smul.addr %s209, 2
        %s213 = sadd.s32 %s211, %s212
        %s214 = smul.addr %s213, 4
        %s215 = scalar_lea.vmem %s3, %s214
        %s216 = smul.u32 2, %s22
        %v217 = vld [vmem:[%s1] sm:$0x7]
        %v218 = vld [vmem:[%s179] sm:$0xff]
        %v219 = vld [vmem:[%s2] sm:$0x7]
        %221 = vset.pattern.permute.xlu0 0
        %222 = vperm.xlu0 %221, %v219
        %v223 = vpop.permute.xlu0 %222
        %v226 = vcombine.high %v218, %v218
        %vm227 = vcmask 31744
        %v229 = vsel %vm227, %v217, 0
        %vm231 = vcmask 1043456
        %v232 = vsel %vm231, %v218, 0
        %v234 = vsel %vm231, %v226, 0
        %236 = vmatprep.subr.mxu0 0.0
        %237 = vmatpush1.msra.mxu0 0.0
        %238 = vmatprep.subr.mxu0 0.0
        %239 = vmatpush1.msra.mxu0 0.0
        %240 = vmatprep.subr.mxu0 0.0
        %241 = vmatpush1.msra.mxu0 0.0
        %242 = vmatprep.subr.mxu0 0.0
        %243 = vmatpush1.msra.mxu0 0.0
        %244 = vmatprep.subr.mxu0 0.0
        %245 = vmatpush1.msra.mxu0 0.0
        %246 = vmatprep.subr.mxu0 0.0
        %247 = vmatpush1.msra.mxu0 0.0
        %248 = vmatprep.subr.mxu0 0.0
        %249 = vmatpush1.msra.mxu0 0.0
        %250 = vmatprep.subr.mxu0 0.0
        %251 = vmatpush1.msra.mxu0 0.0
        %252 = vmatprep.subr.mxu0 0.0
        %253 = vmatpush1.msra.mxu0 0.0
        %254 = vmatprep.subr.mxu0 0.0
        %255 = vmatpush1.msra.mxu0 0.0
        %256 = vmatprep.subr.mxu0 0.0
        %257 = vmatpush1.msra.mxu0 0.0
        %258 = vmatprep.subr.mxu0 0.0
        %259 = vmatpush1.msra.mxu0 0.0
        %260 = vmatprep.subr.mxu0 0.0
        %261 = vmatpush1.msra.mxu0 0.0
        %262 = vmatprep.subr.mxu0 0.0
        %263 = vmatpush1.msra.mxu0 0.0
        %264 = vmatprep.subr.mxu0 0.0
        %265 = vmatpush1.msra.mxu0 0.0
        %v266 = vand.u32 %v234, 4294901760
        %267 = vmatprep.subr.mxu0 %v266
        %v268 = vand.u32 %v232, 4294901760
        %269 = vmatpush1.msra.mxu0 %v268
        %270 = vmatprep.subr.mxu0 0.0
        %271 = vmatpush2.msra.mxu0 0.0
        %272 = vmatprep.subr.mxu0 0.0
        %273 = vmatpush2.msra.mxu0 0.0
        %274 = vmatprep.subr.mxu0 0.0
        %275 = vmatpush2.msra.mxu0 0.0
        %276 = vmatprep.subr.mxu0 0.0
        %277 = vmatpush2.msra.mxu0 0.0
        %278 = vmatprep.subr.mxu0 0.0
        %279 = vmatpush2.msra.mxu0 0.0
        %280 = vmatprep.subr.mxu0 0.0
        %281 = vmatpush2.msra.mxu0 0.0
        %282 = vmatprep.subr.mxu0 0.0
        %283 = vmatpush2.msra.mxu0 0.0
        %284 = vmatprep.subr.mxu0 0.0
        %285 = vmatpush2.msra.mxu0 0.0
        %286 = vmatprep.subr.mxu0 0.0
        %287 = vmatpush2.msra.mxu0 0.0
        %288 = vmatprep.subr.mxu0 0.0
        %289 = vmatpush2.msra.mxu0 0.0
        %290 = vmatprep.subr.mxu0 0.0
        %291 = vmatpush2.msra.mxu0 0.0
        %292 = vmatprep.subr.mxu0 0.0
        %293 = vmatpush2.msra.mxu0 0.0
        %294 = vmatprep.subr.mxu0 0.0
        %295 = vmatpush2.msra.mxu0 0.0
        %296 = vmatprep.subr.mxu0 0.0
        %297 = vmatpush2.msra.mxu0 0.0
        %298 = vmatprep.subr.mxu0 0.0
        %299 = vmatpush2.msra.mxu0 0.0
        %300 = vmatprep.subr.mxu0 0.0
        %301 = vmatpush2.msra.mxu0 0.0
        %302 = vmatprep.mubr.f32.mxu0 0.0
        %v303 = vand.u32 %v229, 4294901760
        %v304 = vsub.f32 %v229, %v303
        %v305 = vand.u32 %v304, 4294901760
        %v306 = vsub.f32 %v304, %v305
        %v307 = vand.u32 %v306, 4294901760
        %308 = vmatmul.mubr.f32.gmra.mxu0 %v307
        %v309 = vpop.f32.mrf.mxu0
        %v310 = vadd.f32 %v223, %v309
        %v311 = vpop.f32.mrf.mxu0
        %v312 = vadd.f32 %v223, %v311
        %313 = vdwg.mxu0
        %314 = vmatprep.subr.mxu0 0.0
        %315 = vmatpush1.msra.mxu0 0.0
        %316 = vmatprep.subr.mxu0 0.0
        %317 = vmatpush1.msra.mxu0 0.0
        %318 = vmatprep.subr.mxu0 0.0
        %319 = vmatpush1.msra.mxu0 0.0
        %320 = vmatprep.subr.mxu0 0.0
        %321 = vmatpush1.msra.mxu0 0.0
        %322 = vmatprep.subr.mxu0 0.0
        %323 = vmatpush1.msra.mxu0 0.0
        %324 = vmatprep.subr.mxu0 0.0
        %325 = vmatpush1.msra.mxu0 0.0
        %326 = vmatprep.subr.mxu0 0.0
        %327 = vmatpush1.msra.mxu0 0.0
        %328 = vmatprep.subr.mxu0 0.0
        %329 = vmatpush1.msra.mxu0 0.0
        %330 = vmatprep.subr.mxu0 0.0
        %331 = vmatpush1.msra.mxu0 0.0
        %332 = vmatprep.subr.mxu0 0.0
        %333 = vmatpush1.msra.mxu0 0.0
        %334 = vmatprep.subr.mxu0 0.0
        %335 = vmatpush1.msra.mxu0 0.0
        %336 = vmatprep.subr.mxu0 0.0
        %337 = vmatpush1.msra.mxu0 0.0
        %338 = vmatprep.subr.mxu0 0.0
        %339 = vmatpush1.msra.mxu0 0.0
        %340 = vmatprep.subr.mxu0 0.0
        %341 = vmatpush1.msra.mxu0 0.0
        %342 = vmatprep.subr.mxu0 0.0
        %343 = vmatpush1.msra.mxu0 0.0
        %v344 = vand.u32 %v234, 4294901760
        %v345 = vsub.f32 %v234, %v344
        %v346 = vand.u32 %v345, 4294901760
        %v347 = vsub.f32 %v345, %v346
        %v348 = vand.u32 %v347, 4294901760
        %349 = vmatprep.subr.mxu0 %v348
        %v350 = vand.u32 %v232, 4294901760
        %v351 = vsub.f32 %v232, %v350
        %v352 = vand.u32 %v351, 4294901760
        %v353 = vsub.f32 %v351, %v352
        %v354 = vand.u32 %v353, 4294901760
        %355 = vmatpush1.msra.mxu0 %v354
        %356 = vmatprep.subr.mxu0 0.0
        %357 = vmatpush2.msra.mxu0 0.0
        %358 = vmatprep.subr.mxu0 0.0
        %359 = vmatpush2.msra.mxu0 0.0
        %360 = vmatprep.subr.mxu0 0.0
        %361 = vmatpush2.msra.mxu0 0.0
        %362 = vmatprep.subr.mxu0 0.0
        %363 = vmatpush2.msra.mxu0 0.0
        %364 = vmatprep.subr.mxu0 0.0
        %365 = vmatpush2.msra.mxu0 0.0
        %366 = vmatprep.subr.mxu0 0.0
        %367 = vmatpush2.msra.mxu0 0.0
        %368 = vmatprep.subr.mxu0 0.0
        %369 = vmatpush2.msra.mxu0 0.0
        %370 = vmatprep.subr.mxu0 0.0
        %371 = vmatpush2.msra.mxu0 0.0
        %372 = vmatprep.subr.mxu0 0.0
        %373 = vmatpush2.msra.mxu0 0.0
        %374 = vmatprep.subr.mxu0 0.0
        %375 = vmatpush2.msra.mxu0 0.0
        %376 = vmatprep.subr.mxu0 0.0
        %377 = vmatpush2.msra.mxu0 0.0
        %378 = vmatprep.subr.mxu0 0.0
        %379 = vmatpush2.msra.mxu0 0.0
        %380 = vmatprep.subr.mxu0 0.0
        %381 = vmatpush2.msra.mxu0 0.0
        %382 = vmatprep.subr.mxu0 0.0
        %383 = vmatpush2.msra.mxu0 0.0
        %384 = vmatprep.subr.mxu0 0.0
        %385 = vmatpush2.msra.mxu0 0.0
        %386 = vmatprep.subr.mxu0 0.0
        %387 = vmatpush2.msra.mxu0 0.0
        %388 = vmatprep.mubr.f32.mxu0 0.0
        %v389 = vand.u32 %v229, 4294901760
        %390 = vmatmul.mubr.f32.gmra.mxu0 %v389
        %v391 = vpop.f32.mrf.mxu0
        %v392 = vadd.f32 %v310, %v391
        %v393 = vpop.f32.mrf.mxu0
        %v394 = vadd.f32 %v312, %v393
        %395 = vdwg.mxu0
        %396 = vmatprep.subr.mxu0 0.0
        %397 = vmatpush1.msra.mxu0 0.0
        %398 = vmatprep.subr.mxu0 0.0
        %399 = vmatpush1.msra.mxu0 0.0
        %400 = vmatprep.subr.mxu0 0.0
        %401 = vmatpush1.msra.mxu0 0.0
        %402 = vmatprep.subr.mxu0 0.0
        %403 = vmatpush1.msra.mxu0 0.0
        %404 = vmatprep.subr.mxu0 0.0
        %405 = vmatpush1.msra.mxu0 0.0
        %406 = vmatprep.subr.mxu0 0.0
        %407 = vmatpush1.msra.mxu0 0.0
        %408 = vmatprep.subr.mxu0 0.0
        %409 = vmatpush1.msra.mxu0 0.0
        %410 = vmatprep.subr.mxu0 0.0
        %411 = vmatpush1.msra.mxu0 0.0
        %412 = vmatprep.subr.mxu0 0.0
        %413 = vmatpush1.msra.mxu0 0.0
        %414 = vmatprep.subr.mxu0 0.0
        %415 = vmatpush1.msra.mxu0 0.0
        %416 = vmatprep.subr.mxu0 0.0
        %417 = vmatpush1.msra.mxu0 0.0
        %418 = vmatprep.subr.mxu0 0.0
        %419 = vmatpush1.msra.mxu0 0.0
        %420 = vmatprep.subr.mxu0 0.0
        %421 = vmatpush1.msra.mxu0 0.0
        %422 = vmatprep.subr.mxu0 0.0
        %423 = vmatpush1.msra.mxu0 0.0
        %424 = vmatprep.subr.mxu0 0.0
        %425 = vmatpush1.msra.mxu0 0.0
        %v426 = vand.u32 %v234, 4294901760
        %v427 = vsub.f32 %v234, %v426
        %428 = vmatprep.subr.mxu0 %v427
        %v429 = vand.u32 %v232, 4294901760
        %v430 = vsub.f32 %v232, %v429
        %431 = vmatpush1.msra.mxu0 %v430
        %432 = vmatprep.subr.mxu0 0.0
        %433 = vmatpush2.msra.mxu0 0.0
        %434 = vmatprep.subr.mxu0 0.0
        %435 = vmatpush2.msra.mxu0 0.0
        %436 = vmatprep.subr.mxu0 0.0
        %437 = vmatpush2.msra.mxu0 0.0
        %438 = vmatprep.subr.mxu0 0.0
        %439 = vmatpush2.msra.mxu0 0.0
        %440 = vmatprep.subr.mxu0 0.0
        %441 = vmatpush2.msra.mxu0 0.0
        %442 = vmatprep.subr.mxu0 0.0
        %443 = vmatpush2.msra.mxu0 0.0
        %444 = vmatprep.subr.mxu0 0.0
        %445 = vmatpush2.msra.mxu0 0.0
        %446 = vmatprep.subr.mxu0 0.0
        %447 = vmatpush2.msra.mxu0 0.0
        %448 = vmatprep.subr.mxu0 0.0
        %449 = vmatpush2.msra.mxu0 0.0
        %450 = vmatprep.subr.mxu0 0.0
        %451 = vmatpush2.msra.mxu0 0.0
        %452 = vmatprep.subr.mxu0 0.0
        %453 = vmatpush2.msra.mxu0 0.0
        %454 = vmatprep.subr.mxu0 0.0
        %455 = vmatpush2.msra.mxu0 0.0
        %456 = vmatprep.subr.mxu0 0.0
        %457 = vmatpush2.msra.mxu0 0.0
        %458 = vmatprep.subr.mxu0 0.0
        %459 = vmatpush2.msra.mxu0 0.0
        %460 = vmatprep.subr.mxu0 0.0
        %461 = vmatpush2.msra.mxu0 0.0
        %462 = vmatprep.subr.mxu0 0.0
        %463 = vmatpush2.msra.mxu0 0.0
        %464 = vmatprep.mubr.f32.mxu0 0.0
        %v465 = vand.u32 %v229, 4294901760
        %v466 = vsub.f32 %v229, %v465
        %467 = vmatmul.mubr.f32.gmra.mxu0 %v466
        %v468 = vpop.f32.mrf.mxu0
        %v469 = vadd.f32 %v392, %v468
        %v470 = vpop.f32.mrf.mxu0
        %v471 = vadd.f32 %v394, %v470
        %472 = vdwg.mxu0
        %473 = vmatprep.subr.mxu0 0.0
        %474 = vmatpush1.msra.mxu0 0.0
        %475 = vmatprep.subr.mxu0 0.0
        %476 = vmatpush1.msra.mxu0 0.0
        %477 = vmatprep.subr.mxu0 0.0
        %478 = vmatpush1.msra.mxu0 0.0
        %479 = vmatprep.subr.mxu0 0.0
        %480 = vmatpush1.msra.mxu0 0.0
        %481 = vmatprep.subr.mxu0 0.0
        %482 = vmatpush1.msra.mxu0 0.0
        %483 = vmatprep.subr.mxu0 0.0
        %484 = vmatpush1.msra.mxu0 0.0
        %485 = vmatprep.subr.mxu0 0.0
        %486 = vmatpush1.msra.mxu0 0.0
        %487 = vmatprep.subr.mxu0 0.0
        %488 = vmatpush1.msra.mxu0 0.0
        %489 = vmatprep.subr.mxu0 0.0
        %490 = vmatpush1.msra.mxu0 0.0
        %491 = vmatprep.subr.mxu0 0.0
        %492 = vmatpush1.msra.mxu0 0.0
        %493 = vmatprep.subr.mxu0 0.0
        %494 = vmatpush1.msra.mxu0 0.0
        %495 = vmatprep.subr.mxu0 0.0
        %496 = vmatpush1.msra.mxu0 0.0
        %497 = vmatprep.subr.mxu0 0.0
        %498 = vmatpush1.msra.mxu0 0.0
        %499 = vmatprep.subr.mxu0 0.0
        %500 = vmatpush1.msra.mxu0 0.0
        %501 = vmatprep.subr.mxu0 0.0
        %502 = vmatpush1.msra.mxu0 0.0
        %v503 = vand.u32 %v234, 4294901760
        %504 = vmatprep.subr.mxu0 %v503
        %v505 = vand.u32 %v232, 4294901760
        %506 = vmatpush1.msra.mxu0 %v505
        %507 = vmatprep.subr.mxu0 0.0
        %508 = vmatpush2.msra.mxu0 0.0
        %509 = vmatprep.subr.mxu0 0.0
        %510 = vmatpush2.msra.mxu0 0.0
        %511 = vmatprep.subr.mxu0 0.0
        %512 = vmatpush2.msra.mxu0 0.0
        %513 = vmatprep.subr.mxu0 0.0
        %514 = vmatpush2.msra.mxu0 0.0
        %515 = vmatprep.subr.mxu0 0.0
        %516 = vmatpush2.msra.mxu0 0.0
        %517 = vmatprep.subr.mxu0 0.0
        %518 = vmatpush2.msra.mxu0 0.0
        %519 = vmatprep.subr.mxu0 0.0
        %520 = vmatpush2.msra.mxu0 0.0
        %521 = vmatprep.subr.mxu0 0.0
        %522 = vmatpush2.msra.mxu0 0.0
        %523 = vmatprep.subr.mxu0 0.0
        %524 = vmatpush2.msra.mxu0 0.0
        %525 = vmatprep.subr.mxu0 0.0
        %526 = vmatpush2.msra.mxu0 0.0
        %527 = vmatprep.subr.mxu0 0.0
        %528 = vmatpush2.msra.mxu0 0.0
        %529 = vmatprep.subr.mxu0 0.0
        %530 = vmatpush2.msra.mxu0 0.0
        %531 = vmatprep.subr.mxu0 0.0
        %532 = vmatpush2.msra.mxu0 0.0
        %533 = vmatprep.subr.mxu0 0.0
        %534 = vmatpush2.msra.mxu0 0.0
        %535 = vmatprep.subr.mxu0 0.0
        %536 = vmatpush2.msra.mxu0 0.0
        %537 = vmatprep.subr.mxu0 0.0
        %538 = vmatpush2.msra.mxu0 0.0
        %539 = vmatprep.mubr.f32.mxu0 0.0
        %v540 = vand.u32 %v229, 4294901760
        %v541 = vsub.f32 %v229, %v540
        %v542 = vand.u32 %v541, 4294901760
        %543 = vmatmul.mubr.f32.gmra.mxu0 %v542
        %v544 = vpop.f32.mrf.mxu0
        %v545 = vadd.f32 %v469, %v544
        %v546 = vpop.f32.mrf.mxu0
        %v547 = vadd.f32 %v471, %v546
        %548 = vdwg.mxu0
        %549 = vmatprep.subr.mxu0 0.0
        %550 = vmatpush1.msra.mxu0 0.0
        %551 = vmatprep.subr.mxu0 0.0
        %552 = vmatpush1.msra.mxu0 0.0
        %553 = vmatprep.subr.mxu0 0.0
        %554 = vmatpush1.msra.mxu0 0.0
        %555 = vmatprep.subr.mxu0 0.0
        %556 = vmatpush1.msra.mxu0 0.0
        %557 = vmatprep.subr.mxu0 0.0
        %558 = vmatpush1.msra.mxu0 0.0
        %559 = vmatprep.subr.mxu0 0.0
        %560 = vmatpush1.msra.mxu0 0.0
        %561 = vmatprep.subr.mxu0 0.0
        %562 = vmatpush1.msra.mxu0 0.0
        %563 = vmatprep.subr.mxu0 0.0
        %564 = vmatpush1.msra.mxu0 0.0
        %565 = vmatprep.subr.mxu0 0.0
        %566 = vmatpush1.msra.mxu0 0.0
        %567 = vmatprep.subr.mxu0 0.0
        %568 = vmatpush1.msra.mxu0 0.0
        %569 = vmatprep.subr.mxu0 0.0
        %570 = vmatpush1.msra.mxu0 0.0
        %571 = vmatprep.subr.mxu0 0.0
        %572 = vmatpush1.msra.mxu0 0.0
        %573 = vmatprep.subr.mxu0 0.0
        %574 = vmatpush1.msra.mxu0 0.0
        %575 = vmatprep.subr.mxu0 0.0
        %576 = vmatpush1.msra.mxu0 0.0
        %577 = vmatprep.subr.mxu0 0.0
        %578 = vmatpush1.msra.mxu0 0.0
        %v579 = vand.u32 %v234, 4294901760
        %v580 = vsub.f32 %v234, %v579
        %v581 = vand.u32 %v580, 4294901760
        %582 = vmatprep.subr.mxu0 %v581
        %v583 = vand.u32 %v232, 4294901760
        %v584 = vsub.f32 %v232, %v583
        %v585 = vand.u32 %v584, 4294901760
        %586 = vmatpush1.msra.mxu0 %v585
        %587 = vmatprep.subr.mxu0 0.0
        %588 = vmatpush2.msra.mxu0 0.0
        %589 = vmatprep.subr.mxu0 0.0
        %590 = vmatpush2.msra.mxu0 0.0
        %591 = vmatprep.subr.mxu0 0.0
        %592 = vmatpush2.msra.mxu0 0.0
        %593 = vmatprep.subr.mxu0 0.0
        %594 = vmatpush2.msra.mxu0 0.0
        %595 = vmatprep.subr.mxu0 0.0
        %596 = vmatpush2.msra.mxu0 0.0
        %597 = vmatprep.subr.mxu0 0.0
        %598 = vmatpush2.msra.mxu0 0.0
        %599 = vmatprep.subr.mxu0 0.0
        %600 = vmatpush2.msra.mxu0 0.0
        %601 = vmatprep.subr.mxu0 0.0
        %602 = vmatpush2.msra.mxu0 0.0
        %603 = vmatprep.subr.mxu0 0.0
        %604 = vmatpush2.msra.mxu0 0.0
        %605 = vmatprep.subr.mxu0 0.0
        %606 = vmatpush2.msra.mxu0 0.0
        %607 = vmatprep.subr.mxu0 0.0
        %608 = vmatpush2.msra.mxu0 0.0
        %609 = vmatprep.subr.mxu0 0.0
        %610 = vmatpush2.msra.mxu0 0.0
        %611 = vmatprep.subr.mxu0 0.0
        %612 = vmatpush2.msra.mxu0 0.0
        %613 = vmatprep.subr.mxu0 0.0
        %614 = vmatpush2.msra.mxu0 0.0
        %615 = vmatprep.subr.mxu0 0.0
        %616 = vmatpush2.msra.mxu0 0.0
        %617 = vmatprep.subr.mxu0 0.0
        %618 = vmatpush2.msra.mxu0 0.0
        %619 = vmatprep.mubr.f32.mxu0 0.0
        %v620 = vand.u32 %v229, 4294901760
        %621 = vmatmul.mubr.f32.gmra.mxu0 %v620
        %v622 = vpop.f32.mrf.mxu0
        %v623 = vadd.f32 %v545, %v622
        %v624 = vpop.f32.mrf.mxu0
        %v625 = vadd.f32 %v547, %v624
        %626 = vdwg.mxu0
        %627 = vmatprep.subr.mxu0 0.0
        %628 = vmatpush1.msra.mxu0 0.0
        %629 = vmatprep.subr.mxu0 0.0
        %630 = vmatpush1.msra.mxu0 0.0
        %631 = vmatprep.subr.mxu0 0.0
        %632 = vmatpush1.msra.mxu0 0.0
        %633 = vmatprep.subr.mxu0 0.0
        %634 = vmatpush1.msra.mxu0 0.0
        %635 = vmatprep.subr.mxu0 0.0
        %636 = vmatpush1.msra.mxu0 0.0
        %637 = vmatprep.subr.mxu0 0.0
        %638 = vmatpush1.msra.mxu0 0.0
        %639 = vmatprep.subr.mxu0 0.0
        %640 = vmatpush1.msra.mxu0 0.0
        %641 = vmatprep.subr.mxu0 0.0
        %642 = vmatpush1.msra.mxu0 0.0
        %643 = vmatprep.subr.mxu0 0.0
        %644 = vmatpush1.msra.mxu0 0.0
        %645 = vmatprep.subr.mxu0 0.0
        %646 = vmatpush1.msra.mxu0 0.0
        %647 = vmatprep.subr.mxu0 0.0
        %648 = vmatpush1.msra.mxu0 0.0
        %649 = vmatprep.subr.mxu0 0.0
        %650 = vmatpush1.msra.mxu0 0.0
        %651 = vmatprep.subr.mxu0 0.0
        %652 = vmatpush1.msra.mxu0 0.0
        %653 = vmatprep.subr.mxu0 0.0
        %654 = vmatpush1.msra.mxu0 0.0
        %655 = vmatprep.subr.mxu0 0.0
        %656 = vmatpush1.msra.mxu0 0.0
        %v657 = vand.u32 %v234, 4294901760
        %658 = vmatprep.subr.mxu0 %v657
        %v659 = vand.u32 %v232, 4294901760
        %660 = vmatpush1.msra.mxu0 %v659
        %661 = vmatprep.subr.mxu0 0.0
        %662 = vmatpush2.msra.mxu0 0.0
        %663 = vmatprep.subr.mxu0 0.0
        %664 = vmatpush2.msra.mxu0 0.0
        %665 = vmatprep.subr.mxu0 0.0
        %666 = vmatpush2.msra.mxu0 0.0
        %667 = vmatprep.subr.mxu0 0.0
        %668 = vmatpush2.msra.mxu0 0.0
        %669 = vmatprep.subr.mxu0 0.0
        %670 = vmatpush2.msra.mxu0 0.0
        %671 = vmatprep.subr.mxu0 0.0
        %672 = vmatpush2.msra.mxu0 0.0
        %673 = vmatprep.subr.mxu0 0.0
        %674 = vmatpush2.msra.mxu0 0.0
        %675 = vmatprep.subr.mxu0 0.0
        %676 = vmatpush2.msra.mxu0 0.0
        %677 = vmatprep.subr.mxu0 0.0
        %678 = vmatpush2.msra.mxu0 0.0
        %679 = vmatprep.subr.mxu0 0.0
        %680 = vmatpush2.msra.mxu0 0.0
        %681 = vmatprep.subr.mxu0 0.0
        %682 = vmatpush2.msra.mxu0 0.0
        %683 = vmatprep.subr.mxu0 0.0
        %684 = vmatpush2.msra.mxu0 0.0
        %685 = vmatprep.subr.mxu0 0.0
        %686 = vmatpush2.msra.mxu0 0.0
        %687 = vmatprep.subr.mxu0 0.0
        %688 = vmatpush2.msra.mxu0 0.0
        %689 = vmatprep.subr.mxu0 0.0
        %690 = vmatpush2.msra.mxu0 0.0
        %691 = vmatprep.subr.mxu0 0.0
        %692 = vmatpush2.msra.mxu0 0.0
        %693 = vmatprep.mubr.f32.mxu0 0.0
        %v694 = vand.u32 %v229, 4294901760
        %695 = vmatmul.mubr.f32.gmra.mxu0 %v694
        %v696 = vpop.f32.mrf.mxu0
        %v697 = vadd.f32 %v623, %v696
        %v698 = vpop.f32.mrf.mxu0
        %v699 = vadd.f32 %v625, %v698
        %700 = vdwg.mxu0
        %v703 = vcombine.low %v697, %v699
        %705 = vst [vmem:[%s215] sm:$0x77] %v703
        %s706 = smul.u32 2, %s22
        %p707 = scmp.lt.s32.totalorder %s21, 1
        %s708 = scalar_select %p707, %s21, 1
        %p709 = scmp.lt.s32.totalorder %s706, 1
        %s710 = scalar_select %p709, %s706, 1
        %s711 = smul.addr %s708, 2
        %s712 = sadd.s32 %s710, %s711
        %s713 = smul.addr %s712, 4
        %s714 = scalar_lea.vmem %s3, %s713
        // Predicated region
        $region37: #{tpu_custom_call.1} parent=31 // pred_check
          %p715 = pneg %p119
        $region38: #{tpu_custom_call.1} parent=31 // pred_check_branch
          %717 = sbr.rel (%p715) target = $region40
        $region39: #{tpu_custom_call.1} parent=31 // pred_region
          %s718 = smul.u32 2, %s22
        $region40: #{tpu_custom_call.1} parent=31 // pred_fallthru
          _
      $region32: #{tpu_custom_call.1} parent=5 // pred_fallthru
        _
      %p719 = scmp.le.s32.totalorder 2, %s12
      // Predicated region
      $region41: #{tpu_custom_call.1} parent=5 // pred_check
        %p720 = pneg %p719
      $region42: #{tpu_custom_call.1} parent=5 // pred_check_branch
        %722 = sbr.rel (%p720) target = $region44
      $region43: #{tpu_custom_call.1} parent=5 // pred_region
        %s723 = ssub.s32 %s12, 2
        // Predicated region
        $region45: #{tpu_custom_call.1} parent=43 // pred_check
          %p724 = pneg %p125
        $region46: #{tpu_custom_call.1} parent=43 // pred_check_branch
          %726 = sbr.rel (%p724) target = $region48
        $region47: #{tpu_custom_call.1} parent=43 // pred_region
          %s727 = smul.u32 2, %s24
          %p728 = scmp.lt.s32.totalorder %s23, 1
          %s729 = scalar_select %p728, %s23, 1
          %p730 = scmp.lt.s32.totalorder %s727, 1
          %s731 = scalar_select %p730, %s727, 1
          %s732 = smul.addr %s729, 2
          %s733 = sadd.s32 %s731, %s732
          %s734 = smul.addr %s733, 4
          %s735 = scalar_lea.vmem %s3, %s734
        $region48: #{tpu_custom_call.1} parent=43 // pred_fallthru
          _
      $region44: #{tpu_custom_call.1} parent=5 // pred_fallthru
        _
    $region6: #{tpu_custom_call.1} parent=1 // loop_footer
      %s16 = sadd.s32 1, %s12
    $region7: #{tpu_custom_call.1} parent=1 // loop_footer_branch
      %11 = sbr.rel target = $region3
    $region8: #{tpu_custom_call.1} parent=1 // loop_exit
      _
    %736 = vsyncpa [#allocation3], 1
    %s737 = scalar_lea.sflag [#allocation3], 1
    %738 = vsyncpa %s737, 1

</llo_original>
